<compile_context>
chip_gen: v7x
topology: tpu7x:2x2x1
jax: 0.10.0
libtpu: 0.0.40
codegen_flags: <defaults>
</compile_context>

<pallas_src>
import math

import jax
import jax.numpy as jnp
from jax.experimental import pallas as pl
from jax.experimental.pallas import tpu as pltpu

OBS_PAD = 128   # obs_dim (37) lane-padded inside the kernel
HID1 = 128      # fc1 out
HID_PAD = 128   # fc2 / fc3 out (64) padded to lane width
OUT_PAD = 128   # action_dim (4) padded to lane width (unmasked full-lane vst)


def _round_up(n, m):
    return ((n + m - 1) // m) * m


def _cdiv(a, b):
    return (a + b - 1) // b


def qnet_kernel(x_ref, w1_ref, b1_ref, w2_ref, b2_ref, w3_ref, b3_ref,
                w4_ref, b4_ref, o_ref, xpad_ref):
    """relu(relu(relu(x@W1+b1)@W2+b2)@W3+b3)@W4+b4 on one batch tile."""
    obs_dim = x_ref.shape[1]

    # Lane-pad the raw f32 observations (obs_dim -> 128) in VMEM so the wrapper
    # never runs a separate pad/cast pass over x in HBM.  Padding columns must
    # be zero (zero cols are exact through every layer); the scratch persists
    # across grid steps and megacore splits, so zero it every step rather than
    # only at program_id == 0.
    xpad_ref[...] = jnp.zeros_like(xpad_ref)
    xpad_ref[:, :obs_dim] = x_ref[...]

    # Layer 1 in f32 (x and W1 kept f32: cheapest layer, best accuracy).
    h = jnp.dot(xpad_ref[...], w1_ref[...], preferred_element_type=jnp.float32)
    h = jnp.maximum(h + b1_ref[...], 0.0).astype(jnp.bfloat16)
    # Layers 2-4: bf16 operands on the MXU, f32 accumulate + bias + ReLU.
    h = jnp.dot(h, w2_ref[...], preferred_element_type=jnp.float32)
    h = jnp.maximum(h + b2_ref[...], 0.0).astype(jnp.bfloat16)
    h = jnp.dot(h, w3_ref[...], preferred_element_type=jnp.float32)
    h = jnp.maximum(h + b3_ref[...], 0.0).astype(jnp.bfloat16)
    out = jnp.dot(h, w4_ref[...], preferred_element_type=jnp.float32) + b4_ref[...]
    # bf16 writeback halves output HBM traffic; wrapper casts back to f32.
    o_ref[...] = out.astype(o_ref.dtype)


def _pick_tiling(batch, tb_max):
    """Adaptive batch tile: bounded tail waste, >=2 blocks for v7x megacore."""
    n_blocks = max(1, _cdiv(batch, tb_max))
    if batch >= 1024:          # enough rows to split across v7x's two TCs
        n_blocks = max(n_blocks, 2)
    tb = _round_up(_cdiv(batch, n_blocks), 8)
    n_blocks = _cdiv(batch, tb)
    return tb, n_blocks


def qnet_forward(x, kernel_params, action_dim, *, tb_max=2048):
    """x: [B, obs_dim] float32 -> [B, action_dim] float32."""
    w1, b1, w2, b2, w3, b3, w4, b4 = kernel_params
    B, obs_dim = x.shape
    TB, n_blocks = _pick_tiling(B, tb_max)

    flops = 2 * n_blocks * TB * (OBS_PAD * HID1 + HID1 * HID_PAD
                                 + HID_PAD * HID_PAD + HID_PAD * OUT_PAD)
    weight_bytes = sum(int(p.size) * p.dtype.itemsize for p in kernel_params)
    bytes_accessed = int(x.size) * 4 + weight_bytes + B * OUT_PAD * 2

    out = pl.pallas_call(
        qnet_kernel,
        out_shape=jax.ShapeDtypeStruct((B, OUT_PAD), jnp.bfloat16),
        grid_spec=pltpu.PrefetchScalarGridSpec(
            num_scalar_prefetch=0,
            grid=(n_blocks,),
            in_specs=[
                # raw f32 observations; last dim == full array dim (legal),
                # partial tail block rows are dropped on the output side.
                pl.BlockSpec((TB, obs_dim), lambda i: (i, 0)),
                pl.BlockSpec((OBS_PAD, HID1), lambda i: (0, 0)),      # W1 (f32)
                pl.BlockSpec((1, HID1), lambda i: (0, 0)),            # b1 (f32)
                pl.BlockSpec((HID1, HID_PAD), lambda i: (0, 0)),      # W2 (bf16)
                pl.BlockSpec((1, HID_PAD), lambda i: (0, 0)),         # b2 (f32)
                pl.BlockSpec((HID_PAD, HID_PAD), lambda i: (0, 0)),   # W3 (bf16)
                pl.BlockSpec((1, HID_PAD), lambda i: (0, 0)),         # b3 (f32)
                pl.BlockSpec((HID_PAD, OUT_PAD), lambda i: (0, 0)),   # W4 (bf16)
                pl.BlockSpec((1, OUT_PAD), lambda i: (0, 0)),         # b4 (f32)
            ],
            out_specs=pl.BlockSpec((TB, OUT_PAD), lambda i: (i, 0)),
            scratch_shapes=[pltpu.VMEM((TB, OBS_PAD), jnp.float32)],
        ),
        compiler_params=pltpu.CompilerParams(
            dimension_semantics=("parallel",),
            vmem_limit_bytes=32 * 1024 * 1024),
        cost_estimate=pl.CostEstimate(
            flops=flops, transcendentals=0, bytes_accessed=bytes_accessed),
    )(x, w1, b1, w2, b2, w3, b3, w4, b4)

    return out[:, :action_dim].astype(jnp.float32)


def init_params(key, observation_dim, action_dim):
    """Unpadded f32 params mirroring torch.nn.Linear default init
    (uniform(+-1/sqrt(fan_in)) for weight and bias).  Weights stored as
    [in_features, out_features] so the kernel computes x @ W + b."""
    dims = [(observation_dim, 128), (128, 64), (64, 64), (64, action_dim)]
    params = []
    for fan_in, fan_out in dims:
        key, kw, kb = jax.random.split(key, 3)
        bound = 1.0 / math.sqrt(fan_in)
        w = jax.random.uniform(kw, (fan_in, fan_out), jnp.float32, -bound, bound)
        b = jax.random.uniform(kb, (1, fan_out), jnp.float32, -bound, bound)
        params.extend([w, b])
    return tuple(params)


def pad_params_for_kernel(params):
    """Zero-pad all layers to lane-dense (128-wide) shapes ONCE (kept resident
    across calls).  W1 stays f32 (layer-1 accuracy); W2-W4 are bf16 for the
    MXU; biases stay f32 (added to the f32 accumulator).  Zero rows/cols are
    exact through ReLU, so results match the unpadded network."""
    w1, b1, w2, b2, w3, b3, w4, b4 = params

    def pad_w(w, rows, cols, dtype):
        out = jnp.zeros((rows, cols), jnp.float32)
        out = out.at[:w.shape[0], :w.shape[1]].set(w)
        return out.astype(dtype)

    def pad_b(b, cols):
        out = jnp.zeros((1, cols), jnp.float32)
        return out.at[:, :b.shape[1]].set(b)

    return (
        pad_w(w1, OBS_PAD, HID1, jnp.float32), pad_b(b1, HID1),
        pad_w(w2, HID1, HID_PAD, jnp.bfloat16), pad_b(b2, HID_PAD),
        pad_w(w3, HID_PAD, HID_PAD, jnp.bfloat16), pad_b(b3, HID_PAD),
        pad_w(w4, HID_PAD, OUT_PAD, jnp.bfloat16), pad_b(b4, OUT_PAD),
    )


def reference_forward(x, params):
    """Plain-JAX f32 reference matching the PyTorch module."""
    w1, b1, w2, b2, w3, b3, w4, b4 = params
    h = jnp.maximum(x @ w1 + b1, 0.0)
    h = jnp.maximum(h @ w2 + b2, 0.0)
    h = jnp.maximum(h @ w3 + b3, 0.0)
    return h @ w4 + b4


if __name__ == "__main__":
    # Banana-navigation-like sizes: 37-dim observation, 4 actions.
    observation_dim, action_dim = 37, 4

    key = jax.random.PRNGKey(0)
    key, kx = jax.random.split(key)
    params = init_params(key, observation_dim, action_dim)
    kernel_params = pad_params_for_kernel(params)   # pad/cast once, reuse

    # Small single-step inference batch.
    x = jax.random.normal(kx, (2, observation_dim), jnp.float32)
    out = jax.block_until_ready(qnet_forward(x, kernel_params, action_dim))
    ref = reference_forward(x, params)
    assert out.shape == (2, action_dim)
    assert jnp.allclose(out, ref, atol=5e-2, rtol=5e-2), "mismatch vs reference (B=2)"

    # Multi-block grid + ragged-tail check (small tb_max forces several grid
    # steps and a partial last block: tests weight residency and tail drop).
    key, kx2 = jax.random.split(key)
    x2 = jax.random.normal(kx2, (40, observation_dim), jnp.float32)
    out2 = jax.block_until_ready(
        qnet_forward(x2, kernel_params, action_dim, tb_max=16))
    ref2 = reference_forward(x2, params)
    assert out2.shape == (40, action_dim)
    assert jnp.allclose(out2, ref2, atol=5e-2, rtol=5e-2), "mismatch vs reference (B=40)"

    print("KERNEL_OK")
</pallas_src>

<mosaic_0001>
module attributes {stable_mosaic.version = 11 : i64} {
  func.func @qnet_kernel(%arg0: i32, %arg1: memref<8x37xf32, #tpu.memory_space<vmem>>, %arg2: memref<128x128xf32, #tpu.memory_space<vmem>>, %arg3: memref<1x128xf32, #tpu.memory_space<vmem>>, %arg4: memref<128x128xbf16, #tpu.memory_space<vmem>>, %arg5: memref<1x128xf32, #tpu.memory_space<vmem>>, %arg6: memref<128x128xbf16, #tpu.memory_space<vmem>>, %arg7: memref<1x128xf32, #tpu.memory_space<vmem>>, %arg8: memref<128x128xbf16, #tpu.memory_space<vmem>>, %arg9: memref<1x128xf32, #tpu.memory_space<vmem>>, %arg10: memref<8x128xbf16, #tpu.memory_space<vmem>>, %arg11: memref<8x128xf32, #tpu.memory_space<vmem>>) attributes {dimension_semantics = [#tpu.dimension_semantics<parallel>], iteration_bounds = array<i64: 1>, scalar_prefetch = 0 : i64, scratch_operands = 1 : i64, tpu.core_type = #tpu.core_type<tc>, window_params = [{transform_indices = @transform_0, window_bounds = array<i64: 8, 37>}, {pipeline_mode = #tpu.pipeline_mode<synchronous>, transform_indices = @transform_1, window_bounds = array<i64: 128, 128>}, {pipeline_mode = #tpu.pipeline_mode<synchronous>, transform_indices = @transform_2, window_bounds = array<i64: 1, 128>}, {pipeline_mode = #tpu.pipeline_mode<synchronous>, transform_indices = @transform_3, window_bounds = array<i64: 128, 128>}, {pipeline_mode = #tpu.pipeline_mode<synchronous>, transform_indices = @transform_4, window_bounds = array<i64: 1, 128>}, {pipeline_mode = #tpu.pipeline_mode<synchronous>, transform_indices = @transform_5, window_bounds = array<i64: 128, 128>}, {pipeline_mode = #tpu.pipeline_mode<synchronous>, transform_indices = @transform_6, window_bounds = array<i64: 1, 128>}, {pipeline_mode = #tpu.pipeline_mode<synchronous>, transform_indices = @transform_7, window_bounds = array<i64: 128, 128>}, {pipeline_mode = #tpu.pipeline_mode<synchronous>, transform_indices = @transform_8, window_bounds = array<i64: 1, 128>}, {transform_indices = @transform_9, window_bounds = array<i64: 8, 128>}]} {
    %cst = arith.constant 0.000000e+00 : f32
    %0 = vector.broadcast %cst : f32 to vector<8x128xf32>
    %c0 = arith.constant 0 : index
    %c0_0 = arith.constant 0 : index
    %1 = vector.load %arg11[%c0, %c0_0] : memref<8x128xf32, #tpu.memory_space<vmem>>, vector<8x128xf32>
    tpu.vector_store %arg11[%c0, %c0_0], %0 {strides = array<i32>} : memref<8x128xf32, #tpu.memory_space<vmem>>, vector<8x128xf32>,
    %c0_1 = arith.constant 0 : index
    %c0_2 = arith.constant 0 : index
    %2 = vector.load %arg1[%c0_1, %c0_2] : memref<8x37xf32, #tpu.memory_space<vmem>>, vector<8x37xf32>
    %c0_3 = arith.constant 0 : index
    %c0_4 = arith.constant 0 : index
    %3 = vector.load %arg11[%c0_3, %c0_4] : memref<8x128xf32, #tpu.memory_space<vmem>>, vector<8x37xf32>
    tpu.vector_store %arg11[%c0_3, %c0_4], %2 {strides = array<i32>} : memref<8x128xf32, #tpu.memory_space<vmem>>, vector<8x37xf32>,
    %c0_5 = arith.constant 0 : index
    %c0_6 = arith.constant 0 : index
    %4 = vector.load %arg11[%c0_5, %c0_6] : memref<8x128xf32, #tpu.memory_space<vmem>>, vector<8x128xf32>
    %c0_7 = arith.constant 0 : index
    %c0_8 = arith.constant 0 : index
    %5 = vector.load %arg2[%c0_7, %c0_8] : memref<128x128xf32, #tpu.memory_space<vmem>>, vector<128x128xf32>
    %cst_9 = arith.constant dense<0.000000e+00> : vector<8x128xf32>
    %6 = tpu.matmul %4, %5, %cst_9 {dimension_numbers = #tpu.dot_dimension_numbers<[1], [0], [0], [1], [0, 0, 1, 1], [], []>} : vector<8x128xf32>, vector<128x128xf32>, vector<8x128xf32> -> vector<8x128xf32>
    %c0_10 = arith.constant 0 : index
    %c0_11 = arith.constant 0 : index
    %7 = vector.load %arg3[%c0_10, %c0_11] : memref<1x128xf32, #tpu.memory_space<vmem>>, vector<1x128xf32>
    %8 = vector.broadcast %7 : vector<1x128xf32> to vector<8x128xf32>
    %9 = arith.addf %6, %8 : vector<8x128xf32>
    %cst_12 = arith.constant 0.000000e+00 : f32
    %10 = vector.broadcast %cst_12 : f32 to vector<8x128xf32>
    %11 = arith.maximumf %9, %10 : vector<8x128xf32>
    %12 = arith.truncf %11 : vector<8x128xf32> to vector<8x128xbf16>
    %c0_13 = arith.constant 0 : index
    %c0_14 = arith.constant 0 : index
    %13 = vector.load %arg4[%c0_13, %c0_14] : memref<128x128xbf16, #tpu.memory_space<vmem>>, vector<128x128xbf16>
    %cst_15 = arith.constant dense<0.000000e+00> : vector<8x128xf32>
    %14 = tpu.matmul %12, %13, %cst_15 {dimension_numbers = #tpu.dot_dimension_numbers<[1], [0], [0], [1], [0, 0, 1, 1], [], []>} : vector<8x128xbf16>, vector<128x128xbf16>, vector<8x128xf32> -> vector<8x128xf32>
    %c0_16 = arith.constant 0 : index
    %c0_17 = arith.constant 0 : index
    %15 = vector.load %arg5[%c0_16, %c0_17] : memref<1x128xf32, #tpu.memory_space<vmem>>, vector<1x128xf32>
    %16 = vector.broadcast %15 : vector<1x128xf32> to vector<8x128xf32>
    %17 = arith.addf %14, %16 : vector<8x128xf32>
    %cst_18 = arith.constant 0.000000e+00 : f32
    %18 = vector.broadcast %cst_18 : f32 to vector<8x128xf32>
    %19 = arith.maximumf %17, %18 : vector<8x128xf32>
    %20 = arith.truncf %19 : vector<8x128xf32> to vector<8x128xbf16>
    %c0_19 = arith.constant 0 : index
    %c0_20 = arith.constant 0 : index
    %21 = vector.load %arg6[%c0_19, %c0_20] : memref<128x128xbf16, #tpu.memory_space<vmem>>, vector<128x128xbf16>
    %cst_21 = arith.constant dense<0.000000e+00> : vector<8x128xf32>
    %22 = tpu.matmul %20, %21, %cst_21 {dimension_numbers = #tpu.dot_dimension_numbers<[1], [0], [0], [1], [0, 0, 1, 1], [], []>} : vector<8x128xbf16>, vector<128x128xbf16>, vector<8x128xf32> -> vector<8x128xf32>
    %c0_22 = arith.constant 0 : index
    %c0_23 = arith.constant 0 : index
    %23 = vector.load %arg7[%c0_22, %c0_23] : memref<1x128xf32, #tpu.memory_space<vmem>>, vector<1x128xf32>
    %24 = vector.broadcast %23 : vector<1x128xf32> to vector<8x128xf32>
    %25 = arith.addf %22, %24 : vector<8x128xf32>
    %cst_24 = arith.constant 0.000000e+00 : f32
    %26 = vector.broadcast %cst_24 : f32 to vector<8x128xf32>
    %27 = arith.maximumf %25, %26 : vector<8x128xf32>
    %28 = arith.truncf %27 : vector<8x128xf32> to vector<8x128xbf16>
    %c0_25 = arith.constant 0 : index
    %c0_26 = arith.constant 0 : index
    %29 = vector.load %arg8[%c0_25, %c0_26] : memref<128x128xbf16, #tpu.memory_space<vmem>>, vector<128x128xbf16>
    %cst_27 = arith.constant dense<0.000000e+00> : vector<8x128xf32>
    %30 = tpu.matmul %28, %29, %cst_27 {dimension_numbers = #tpu.dot_dimension_numbers<[1], [0], [0], [1], [0, 0, 1, 1], [], []>} : vector<8x128xbf16>, vector<128x128xbf16>, vector<8x128xf32> -> vector<8x128xf32>
    %c0_28 = arith.constant 0 : index
    %c0_29 = arith.constant 0 : index
    %31 = vector.load %arg9[%c0_28, %c0_29] : memref<1x128xf32, #tpu.memory_space<vmem>>, vector<1x128xf32>
    %32 = vector.broadcast %31 : vector<1x128xf32> to vector<8x128xf32>
    %33 = arith.addf %30, %32 : vector<8x128xf32>
    %34 = arith.truncf %33 : vector<8x128xf32> to vector<8x128xbf16>
    %c0_30 = arith.constant 0 : index
    %c0_31 = arith.constant 0 : index
    %35 = vector.load %arg10[%c0_30, %c0_31] : memref<8x128xbf16, #tpu.memory_space<vmem>>, vector<8x128xbf16>
    tpu.vector_store %arg10[%c0_30, %c0_31], %34 {strides = array<i32>} : memref<8x128xbf16, #tpu.memory_space<vmem>>, vector<8x128xbf16>,
    return
  }
  func.func @transform_0(%arg0: i32) -> (i32, i32) {
    %c0_i32 = arith.constant 0 : i32
    %c0_i32_0 = arith.constant 0 : i32
    return %arg0, %c0_i32 : i32, i32
  }
  func.func @transform_1(%arg0: i32) -> (i32, i32) {
    %c0_i32 = arith.constant 0 : i32
    %c0_i32_0 = arith.constant 0 : i32
    %c0_i32_1 = arith.constant 0 : i32
    return %c0_i32, %c0_i32_0 : i32, i32
  }
  func.func @transform_2(%arg0: i32) -> (i32, i32) {
    %c0_i32 = arith.constant 0 : i32
    %c0_i32_0 = arith.constant 0 : i32
    %c0_i32_1 = arith.constant 0 : i32
    return %c0_i32, %c0_i32_0 : i32, i32
  }
  func.func @transform_3(%arg0: i32) -> (i32, i32) {
    %c0_i32 = arith.constant 0 : i32
    %c0_i32_0 = arith.constant 0 : i32
    %c0_i32_1 = arith.constant 0 : i32
    return %c0_i32, %c0_i32_0 : i32, i32
  }
  func.func @transform_4(%arg0: i32) -> (i32, i32) {
    %c0_i32 = arith.constant 0 : i32
    %c0_i32_0 = arith.constant 0 : i32
    %c0_i32_1 = arith.constant 0 : i32
    return %c0_i32, %c0_i32_0 : i32, i32
  }
  func.func @transform_5(%arg0: i32) -> (i32, i32) {
    %c0_i32 = arith.constant 0 : i32
    %c0_i32_0 = arith.constant 0 : i32
    %c0_i32_1 = arith.constant 0 : i32
    return %c0_i32, %c0_i32_0 : i32, i32
  }
  func.func @transform_6(%arg0: i32) -> (i32, i32) {
    %c0_i32 = arith.constant 0 : i32
    %c0_i32_0 = arith.constant 0 : i32
    %c0_i32_1 = arith.constant 0 : i32
    return %c0_i32, %c0_i32_0 : i32, i32
  }
  func.func @transform_7(%arg0: i32) -> (i32, i32) {
    %c0_i32 = arith.constant 0 : i32
    %c0_i32_0 = arith.constant 0 : i32
    %c0_i32_1 = arith.constant 0 : i32
    return %c0_i32, %c0_i32_0 : i32, i32
  }
  func.func @transform_8(%arg0: i32) -> (i32, i32) {
    %c0_i32 = arith.constant 0 : i32
    %c0_i32_0 = arith.constant 0 : i32
    %c0_i32_1 = arith.constant 0 : i32
    return %c0_i32, %c0_i32_0 : i32, i32
  }
  func.func @transform_9(%arg0: i32) -> (i32, i32) {
    %c0_i32 = arith.constant 0 : i32
    %c0_i32_0 = arith.constant 0 : i32
    return %arg0, %c0_i32 : i32, i32
  }
}

</mosaic_0001>

<llo_original>
// kernel: tpu_custom_call.1
$region0: #{tpu_custom_call.1}
  #allocation0 [shape = 'u32[]', space=smem, size = 0x4, offset = 0x4, fixed_abs, tag = 'smem constant byte address 0x4 - core index']
  #allocation1 [shape = 'u32[144,128]{1,0:T(1,128)}', space=vmem, size = 0x12000, scoped, tag = 'internal scratch']
  #allocation2 [shape = 'f32[8,128]{1,0:T(8,128)}', space=vmem, size = 0x1000, scoped, tag = 'scratch operand']
  %s0 = inlined_call_operand.hbm [shape: f32[2,37], index: 0, kind: input, shape index: {}]
  %s1 = inlined_call_operand.hbm [shape: f32[128,128], index: 1, kind: input, shape index: {}]
  %s2 = inlined_call_operand.vmem [shape: f32[1,128], index: 2, kind: input, shape index: {}]
  %s3 = inlined_call_operand.hbm [shape: bf16[128,128], index: 3, kind: input, shape index: {}]
  %s4 = inlined_call_operand.vmem [shape: f32[1,128], index: 4, kind: input, shape index: {}]
  %s5 = inlined_call_operand.hbm [shape: bf16[128,128], index: 5, kind: input, shape index: {}]
  %s6 = inlined_call_operand.vmem [shape: f32[1,128], index: 6, kind: input, shape index: {}]
  %s7 = inlined_call_operand.hbm [shape: bf16[128,128], index: 7, kind: input, shape index: {}]
  %s8 = inlined_call_operand.vmem [shape: f32[1,128], index: 8, kind: input, shape index: {}]
  %s9 = inlined_call_operand.hbm [shape: bf16[2,128], index: 9, kind: output, shape index: {}]
  %s10 = sld [smem:[#allocation0]]
  $region66: #{tpu_custom_call.1} parent=0
    _
  %s12 = ssub.s32 1, %s10
  %s13 = scalar_select 0, %s12, %s10
  $region1: #{tpu_custom_call.1} parent=0
    #allocation3 [shape = 'u8[4096]{0}', space=vmem, size = 0x1000, scoped, tag = 'input window, operand 0, single buffered']
    #allocation4 [shape = 's32[1]{0}', space=sflag, size = 0x4, scoped, tag = 'scoped memory for tpu_custom_call.1']
    #allocation5 [shape = 's32[1]{0}', space=sflag, size = 0x4, scoped, tag = 'scoped memory for tpu_custom_call.1']
    #allocation6 [shape = 'u8[65536]{0}', space=vmem, size = 0x10000, scoped, tag = 'input window, operand 1, single buffered']
    #allocation7 [shape = 's32[1]{0}', space=sflag, size = 0x4, scoped, tag = 'scoped memory for tpu_custom_call.1']
    #allocation8 [shape = 'u8[32768]{0}', space=vmem, size = 0x8000, scoped, tag = 'input window, operand 3, single buffered']
    #allocation9 [shape = 'u8[32768]{0}', space=vmem, size = 0x8000, scoped, tag = 'input window, operand 5, single buffered']
    #allocation10 [shape = 's32[1]{0}', space=sflag, size = 0x4, scoped, tag = 'scoped memory for tpu_custom_call.1']
    #allocation11 [shape = 'u8[32768]{0}', space=vmem, size = 0x8000, scoped, tag = 'input window, operand 7, single buffered']
    #allocation12 [shape = 'u8[2048]{0}', space=vmem, size = 0x800, scoped, tag = 'output window, operand 0, single buffered']
    %14 = vsyncpa [#allocation4], 0
    %15 = vsyncpa [#allocation7], 0
    %16 = vsyncpa [#allocation10], 0
    %17 = vsyncpa [#allocation5], 0
    // Predicated region
    $region2: #{tpu_custom_call.1} parent=1 // pred_check
      _
    $region3: #{tpu_custom_call.1} parent=1 // pred_check_branch
      %19 = sbr.rel (0) target = $region5
    $region4: #{tpu_custom_call.1} parent=1 // pred_region
      %s21 = ssub.s32 128, 32
      %22 = vsyncadd [#allocation4], %s21
      %s23 = sshll.u32 [#allocation3], 4
      %s24 = int_to_ptr.vmem [resolvable:$true] %s23
      %29 = dma.hbm_to_vmem [thread:$0]  %s0, 32, %s24, [#allocation4], 32, 32, 2
    $region5: #{tpu_custom_call.1} parent=1 // pred_fallthru
      _
    // Predicated region
    $region6: #{tpu_custom_call.1} parent=1 // pred_check
      _
    $region7: #{tpu_custom_call.1} parent=1 // pred_check_branch
      %31 = sbr.rel (0) target = $region9
    $region8: #{tpu_custom_call.1} parent=1 // pred_region
      %s33 = ssub.s32 2048, 2048
      %34 = vsyncadd [#allocation7], %s33
      %s35 = sshll.u32 [#allocation6], 4
      %s36 = int_to_ptr.vmem [resolvable:$true] %s35
      %41 = dma.hbm_to_vmem [thread:$0]  %s1, 2048, %s36, [#allocation7], 128, 128, 8
    $region9: #{tpu_custom_call.1} parent=1 // pred_fallthru
      _
    // Predicated region
    $region10: #{tpu_custom_call.1} parent=1 // pred_check
      _
    $region11: #{tpu_custom_call.1} parent=1 // pred_check_branch
      %43 = sbr.rel (0) target = $region13
    $region12: #{tpu_custom_call.1} parent=1 // pred_region
      _
    $region13: #{tpu_custom_call.1} parent=1 // pred_fallthru
      _
    // Predicated region
    $region14: #{tpu_custom_call.1} parent=1 // pred_check
      _
    $region15: #{tpu_custom_call.1} parent=1 // pred_check_branch
      %45 = sbr.rel (0) target = $region17
    $region16: #{tpu_custom_call.1} parent=1 // pred_region
      %s47 = ssub.s32 1024, 1024
      %48 = vsyncadd [#allocation7], %s47
      %s49 = sshll.u32 [#allocation8], 4
      %s50 = int_to_ptr.vmem [resolvable:$true] %s49
      %55 = dma.hbm_to_vmem [thread:$0]  %s3, 1024, %s50, [#allocation7], 64, 64, 4
    $region17: #{tpu_custom_call.1} parent=1 // pred_fallthru
      _
    // Predicated region
    $region18: #{tpu_custom_call.1} parent=1 // pred_check
      _
    $region19: #{tpu_custom_call.1} parent=1 // pred_check_branch
      %57 = sbr.rel (0) target = $region21
    $region20: #{tpu_custom_call.1} parent=1 // pred_region
      _
    $region21: #{tpu_custom_call.1} parent=1 // pred_fallthru
      _
    // Predicated region
    $region22: #{tpu_custom_call.1} parent=1 // pred_check
      _
    $region23: #{tpu_custom_call.1} parent=1 // pred_check_branch
      %59 = sbr.rel (0) target = $region25
    $region24: #{tpu_custom_call.1} parent=1 // pred_region
      %s61 = ssub.s32 1024, 1024
      %62 = vsyncadd [#allocation10], %s61
      %s63 = sshll.u32 [#allocation9], 4
      %s64 = int_to_ptr.vmem [resolvable:$true] %s63
      %69 = dma.hbm_to_vmem [thread:$0]  %s5, 1024, %s64, [#allocation10], 64, 64, 4
    $region25: #{tpu_custom_call.1} parent=1 // pred_fallthru
      _
    // Predicated region
    $region26: #{tpu_custom_call.1} parent=1 // pred_check
      _
    $region27: #{tpu_custom_call.1} parent=1 // pred_check_branch
      %71 = sbr.rel (0) target = $region29
    $region28: #{tpu_custom_call.1} parent=1 // pred_region
      _
    $region29: #{tpu_custom_call.1} parent=1 // pred_fallthru
      _
    // Predicated region
    $region30: #{tpu_custom_call.1} parent=1 // pred_check
      _
    $region31: #{tpu_custom_call.1} parent=1 // pred_check_branch
      %73 = sbr.rel (0) target = $region33
    $region32: #{tpu_custom_call.1} parent=1 // pred_region
      %s75 = ssub.s32 1024, 1024
      %76 = vsyncadd [#allocation10], %s75
      %s77 = sshll.u32 [#allocation11], 4
      %s78 = int_to_ptr.vmem [resolvable:$true] %s77
      %83 = dma.hbm_to_vmem [thread:$0]  %s7, 1024, %s78, [#allocation10], 64, 64, 4
    $region33: #{tpu_custom_call.1} parent=1 // pred_fallthru
      _
    // Predicated region
    $region34: #{tpu_custom_call.1} parent=1 // pred_check
      _
    $region35: #{tpu_custom_call.1} parent=1 // pred_check_branch
      %85 = sbr.rel (0) target = $region37
    $region36: #{tpu_custom_call.1} parent=1 // pred_region
      _
    $region37: #{tpu_custom_call.1} parent=1 // pred_fallthru
      _
    // Predicated region
    $region38: #{tpu_custom_call.1} parent=1 // pred_check
      _
    $region39: #{tpu_custom_call.1} parent=1 // pred_check_branch
      %87 = sbr.rel (0) target = $region41
    $region40: #{tpu_custom_call.1} parent=1 // pred_region
      %88 = dma.done [#allocation4], 128
    $region41: #{tpu_custom_call.1} parent=1 // pred_fallthru
      _
    // Predicated region
    $region42: #{tpu_custom_call.1} parent=1 // pred_check
      _
    $region43: #{tpu_custom_call.1} parent=1 // pred_check_branch
      %90 = sbr.rel (0) target = $region45
    $region44: #{tpu_custom_call.1} parent=1 // pred_region
      %91 = dma.done [#allocation7], 2048
    $region45: #{tpu_custom_call.1} parent=1 // pred_fallthru
      _
    // Predicated region
    $region46: #{tpu_custom_call.1} parent=1 // pred_check
      _
    $region47: #{tpu_custom_call.1} parent=1 // pred_check_branch
      %93 = sbr.rel (0) target = $region49
    $region48: #{tpu_custom_call.1} parent=1 // pred_region
      %94 = dma.done [#allocation7], 1024
    $region49: #{tpu_custom_call.1} parent=1 // pred_fallthru
      _
    // Predicated region
    $region50: #{tpu_custom_call.1} parent=1 // pred_check
      _
    $region51: #{tpu_custom_call.1} parent=1 // pred_check_branch
      %96 = sbr.rel (0) target = $region53
    $region52: #{tpu_custom_call.1} parent=1 // pred_region
      %97 = dma.done [#allocation10], 1024
    $region53: #{tpu_custom_call.1} parent=1 // pred_fallthru
      _
    // Predicated region
    $region54: #{tpu_custom_call.1} parent=1 // pred_check
      _
    $region55: #{tpu_custom_call.1} parent=1 // pred_check_branch
      %99 = sbr.rel (0) target = $region57
    $region56: #{tpu_custom_call.1} parent=1 // pred_region
      %100 = dma.done [#allocation10], 1024
    $region57: #{tpu_custom_call.1} parent=1 // pred_fallthru
      _
    %102 = vst [vmem:[#allocation2] sm:$0xff] 0.0
    %v103 = vld [vmem:[#allocation3] sm:$0xff]
    %vm104 = vcmask 302080
    %105 = vst.msk [vmem:[#allocation2] sm:$0xff] %vm104, %v103
    %v106 = vld [vmem:[#allocation2] sm:$0xff]
    %v107 = vld [vmem:[#allocation6] sm:$0xff]
    %v108 = vld [vmem:[#allocation6 + $0x8] sm:$0xff]
    %v109 = vld [vmem:[#allocation6 + $0x10] sm:$0xff]
    %v110 = vld [vmem:[#allocation6 + $0x18] sm:$0xff]
    %v111 = vld [vmem:[#allocation6 + $0x20] sm:$0xff]
    %v112 = vld [vmem:[#allocation6 + $0x28] sm:$0xff]
    %v113 = vld [vmem:[#allocation6 + $0x30] sm:$0xff]
    %v114 = vld [vmem:[#allocation6 + $0x38] sm:$0xff]
    %v115 = vld [vmem:[#allocation6 + $0x40] sm:$0xff]
    %v116 = vld [vmem:[#allocation6 + $0x48] sm:$0xff]
    %v117 = vld [vmem:[#allocation6 + $0x50] sm:$0xff]
    %v118 = vld [vmem:[#allocation6 + $0x58] sm:$0xff]
    %v119 = vld [vmem:[#allocation6 + $0x60] sm:$0xff]
    %v120 = vld [vmem:[#allocation6 + $0x68] sm:$0xff]
    %v121 = vld [vmem:[#allocation6 + $0x70] sm:$0xff]
    %v122 = vld [vmem:[#allocation6 + $0x78] sm:$0xff]
    %v123 = vld [vmem:[%s2] sm:$0x1]
    %v125 = vlaneseq
    %v126 = vshrl.u32 %v125, 7
    %v127 = vsub.s32 0, %v126
    %v128 = vrot.slane %v123, %v127
    %130 = vmatprep.subr.mxu0 0.0
    %131 = vmatpush1.msra.mxu0 %v107
    %132 = vmatprep.subr.mxu0 0.0
    %133 = vmatpush1.msra.mxu0 %v108
    %134 = vmatprep.subr.mxu0 0.0
    %135 = vmatpush1.msra.mxu0 %v109
    %136 = vmatprep.subr.mxu0 0.0
    %137 = vmatpush1.msra.mxu0 %v110
    %138 = vmatprep.subr.mxu0 0.0
    %139 = vmatpush1.msra.mxu0 %v111
    %140 = vmatprep.subr.mxu0 0.0
    %141 = vmatpush1.msra.mxu0 %v112
    %142 = vmatprep.subr.mxu0 0.0
    %143 = vmatpush1.msra.mxu0 %v113
    %144 = vmatprep.subr.mxu0 0.0
    %145 = vmatpush1.msra.mxu0 %v114
    %146 = vmatprep.subr.mxu0 0.0
    %147 = vmatpush1.msra.mxu0 %v115
    %148 = vmatprep.subr.mxu0 0.0
    %149 = vmatpush1.msra.mxu0 %v116
    %150 = vmatprep.subr.mxu0 0.0
    %151 = vmatpush1.msra.mxu0 %v117
    %152 = vmatprep.subr.mxu0 0.0
    %153 = vmatpush1.msra.mxu0 %v118
    %154 = vmatprep.subr.mxu0 0.0
    %155 = vmatpush1.msra.mxu0 %v119
    %156 = vmatprep.subr.mxu0 0.0
    %157 = vmatpush1.msra.mxu0 %v120
    %158 = vmatprep.subr.mxu0 0.0
    %159 = vmatpush1.msra.mxu0 %v121
    %160 = vmatprep.subr.mxu0 0.0
    %161 = vmatpush1.msra.mxu0 %v122
    %162 = vmatprep.subr.mxu0 0.0
    %163 = vmatpush1.msra.mxu0 0.0
    %164 = vmatprep.subr.mxu0 0.0
    %165 = vmatpush1.msra.mxu0 0.0
    %166 = vmatprep.subr.mxu0 0.0
    %167 = vmatpush1.msra.mxu0 0.0
    %168 = vmatprep.subr.mxu0 0.0
    %169 = vmatpush1.msra.mxu0 0.0
    %170 = vmatprep.subr.mxu0 0.0
    %171 = vmatpush1.msra.mxu0 0.0
    %172 = vmatprep.subr.mxu0 0.0
    %173 = vmatpush1.msra.mxu0 0.0
    %174 = vmatprep.subr.mxu0 0.0
    %175 = vmatpush1.msra.mxu0 0.0
    %176 = vmatprep.subr.mxu0 0.0
    %177 = vmatpush1.msra.mxu0 0.0
    %178 = vmatprep.subr.mxu0 0.0
    %179 = vmatpush1.msra.mxu0 0.0
    %180 = vmatprep.subr.mxu0 0.0
    %181 = vmatpush1.msra.mxu0 0.0
    %182 = vmatprep.subr.mxu0 0.0
    %183 = vmatpush1.msra.mxu0 0.0
    %184 = vmatprep.subr.mxu0 0.0
    %185 = vmatpush1.msra.mxu0 0.0
    %186 = vmatprep.subr.mxu0 0.0
    %187 = vmatpush1.msra.mxu0 0.0
    %188 = vmatprep.subr.mxu0 0.0
    %189 = vmatpush1.msra.mxu0 0.0
    %190 = vmatprep.subr.mxu0 0.0
    %191 = vmatpush1.msra.mxu0 0.0
    %192 = vmatprep.subr.mxu0 0.0
    %193 = vmatpush1.msra.mxu0 0.0
    %194 = vmatprep.mubr.f32.mxu0 0.0
    %195 = vmatmul.mubr.f32.gmra.mrb[0].mxu0 %v106
    %v196 = vpop.f32.mrb[0].mxu0
    %v197 = vadd.f32 %v128, %v196
    %v198 = vpop.f32.mrb[0].mxu0
    %199 = vdwg.mxu0
    %v200 = vmax.f32 %v197, 0.0
    %v201 = vpack.c.bf16 %v200, %v200
    %v202 = vld [vmem:[#allocation8] sm:$0xf]
    %v203 = vld [vmem:[#allocation8 + $0x4] sm:$0xf]
    %v204 = vld [vmem:[#allocation8 + $0x8] sm:$0xf]
    %v205 = vld [vmem:[#allocation8 + $0xc] sm:$0xf]
    %v206 = vld [vmem:[#allocation8 + $0x10] sm:$0xf]
    %v207 = vld [vmem:[#allocation8 + $0x14] sm:$0xf]
    %v208 = vld [vmem:[#allocation8 + $0x18] sm:$0xf]
    %v209 = vld [vmem:[#allocation8 + $0x1c] sm:$0xf]
    %v210 = vld [vmem:[#allocation8 + $0x20] sm:$0xf]
    %v211 = vld [vmem:[#allocation8 + $0x24] sm:$0xf]
    %v212 = vld [vmem:[#allocation8 + $0x28] sm:$0xf]
    %v213 = vld [vmem:[#allocation8 + $0x2c] sm:$0xf]
    %v214 = vld [vmem:[#allocation8 + $0x30] sm:$0xf]
    %v215 = vld [vmem:[#allocation8 + $0x34] sm:$0xf]
    %v216 = vld [vmem:[#allocation8 + $0x38] sm:$0xf]
    %v217 = vld [vmem:[#allocation8 + $0x3c] sm:$0xf]
    %v218 = vld [vmem:[%s4] sm:$0x1]
    %v220 = vlaneseq
    %v221 = vshrl.u32 %v220, 7
    %v222 = vsub.s32 0, %v221
    %v223 = vrot.slane %v218, %v222
    %v241 = vunpack.c.l.b16 %v202
    %v242 = vunpack.c.l.b16 %v203
    %v243 = vunpack.c.l.b16 %v204
    %v244 = vunpack.c.l.b16 %v205
    %v245 = vunpack.c.l.b16 %v206
    %v246 = vunpack.c.l.b16 %v207
    %v247 = vunpack.c.l.b16 %v208
    %v248 = vunpack.c.l.b16 %v209
    %v249 = vunpack.c.l.b16 %v210
    %v250 = vunpack.c.l.b16 %v211
    %v251 = vunpack.c.l.b16 %v212
    %v252 = vunpack.c.l.b16 %v213
    %v253 = vunpack.c.l.b16 %v214
    %v254 = vunpack.c.l.b16 %v215
    %v255 = vunpack.c.l.b16 %v216
    %v256 = vunpack.c.l.b16 %v217
    %v257 = vpack.c.b16 %v242, %v241
    %v258 = vpack.c.b16 %v244, %v243
    %v259 = vpack.c.b16 %v246, %v245
    %v260 = vpack.c.b16 %v248, %v247
    %v261 = vpack.c.b16 %v250, %v249
    %v262 = vpack.c.b16 %v252, %v251
    %v263 = vpack.c.b16 %v254, %v253
    %v264 = vpack.c.b16 %v256, %v255
    %273 = vmatprep.subr.bf16.mxu0 0
    %274 = vmatpush1.bf16.msra.mxu0 %v257
    %275 = vmatprep.subr.bf16.mxu0 0
    %276 = vmatpush1.bf16.msra.mxu0 %v258
    %277 = vmatprep.subr.bf16.mxu0 0
    %278 = vmatpush1.bf16.msra.mxu0 %v259
    %279 = vmatprep.subr.bf16.mxu0 0
    %280 = vmatpush1.bf16.msra.mxu0 %v260
    %281 = vmatprep.subr.bf16.mxu0 0
    %282 = vmatpush1.bf16.msra.mxu0 %v261
    %283 = vmatprep.subr.bf16.mxu0 0
    %284 = vmatpush1.bf16.msra.mxu0 %v262
    %285 = vmatprep.subr.bf16.mxu0 0
    %286 = vmatpush1.bf16.msra.mxu0 %v263
    %287 = vmatprep.subr.bf16.mxu0 0
    %288 = vmatpush1.bf16.msra.mxu0 %v264
    %289 = vmatprep.subr.bf16.mxu0 0
    %290 = vmatpush1.bf16.msra.mxu0 0
    %291 = vmatprep.subr.bf16.mxu0 0
    %292 = vmatpush1.bf16.msra.mxu0 0
    %293 = vmatprep.subr.bf16.mxu0 0
    %294 = vmatpush1.bf16.msra.mxu0 0
    %295 = vmatprep.subr.bf16.mxu0 0
    %296 = vmatpush1.bf16.msra.mxu0 0
    %297 = vmatprep.subr.bf16.mxu0 0
    %298 = vmatpush1.bf16.msra.mxu0 0
    %299 = vmatprep.subr.bf16.mxu0 0
    %300 = vmatpush1.bf16.msra.mxu0 0
    %301 = vmatprep.subr.bf16.mxu0 0
    %302 = vmatpush1.bf16.msra.mxu0 0
    %303 = vmatprep.subr.bf16.mxu0 0
    %304 = vmatpush1.bf16.msra.mxu0 0
    %305 = vmatprep.mubr.bf16.mxu0 0
    %306 = vmatmul.mubr.bf16.gmra.mrb[0].mxu0 %v201
    %v307 = vpop.f32.mrb[0].mxu0
    %v308 = vadd.f32 %v223, %v307
    %v309 = vpop.f32.mrb[0].mxu0
    %v310 = vpop.f32.mrb[0].mxu0
    %v311 = vpop.f32.mrb[0].mxu0
    %312 = vdwg.mxu0
    %v313 = vmax.f32 %v308, 0.0
    %v314 = vpack.c.bf16 %v313, %v313
    %v315 = vld [vmem:[#allocation9] sm:$0xf]
    %v316 = vld [vmem:[#allocation9 + $0x4] sm:$0xf]
    %v317 = vld [vmem:[#allocation9 + $0x8] sm:$0xf]
    %v318 = vld [vmem:[#allocation9 + $0xc] sm:$0xf]
    %v319 = vld [vmem:[#allocation9 + $0x10] sm:$0xf]
    %v320 = vld [vmem:[#allocation9 + $0x14] sm:$0xf]
    %v321 = vld [vmem:[#allocation9 + $0x18] sm:$0xf]
    %v322 = vld [vmem:[#allocation9 + $0x1c] sm:$0xf]
    %v323 = vld [vmem:[#allocation9 + $0x20] sm:$0xf]
    %v324 = vld [vmem:[#allocation9 + $0x24] sm:$0xf]
    %v325 = vld [vmem:[#allocation9 + $0x28] sm:$0xf]
    %v326 = vld [vmem:[#allocation9 + $0x2c] sm:$0xf]
    %v327 = vld [vmem:[#allocation9 + $0x30] sm:$0xf]
    %v328 = vld [vmem:[#allocation9 + $0x34] sm:$0xf]
    %v329 = vld [vmem:[#allocation9 + $0x38] sm:$0xf]
    %v330 = vld [vmem:[#allocation9 + $0x3c] sm:$0xf]
    %v331 = vld [vmem:[%s6] sm:$0x1]
    %v333 = vlaneseq
    %v334 = vshrl.u32 %v333, 7
    %v335 = vsub.s32 0, %v334
    %v336 = vrot.slane %v331, %v335
    %v354 = vunpack.c.l.b16 %v315
    %v355 = vunpack.c.l.b16 %v316
    %v356 = vunpack.c.l.b16 %v317
    %v357 = vunpack.c.l.b16 %v318
    %v358 = vunpack.c.l.b16 %v319
    %v359 = vunpack.c.l.b16 %v320
    %v360 = vunpack.c.l.b16 %v321
    %v361 = vunpack.c.l.b16 %v322
    %v362 = vunpack.c.l.b16 %v323
    %v363 = vunpack.c.l.b16 %v324
    %v364 = vunpack.c.l.b16 %v325
    %v365 = vunpack.c.l.b16 %v326
    %v366 = vunpack.c.l.b16 %v327
    %v367 = vunpack.c.l.b16 %v328
    %v368 = vunpack.c.l.b16 %v329
    %v369 = vunpack.c.l.b16 %v330
    %v370 = vpack.c.b16 %v355, %v354
    %v371 = vpack.c.b16 %v357, %v356
    %v372 = vpack.c.b16 %v359, %v358
    %v373 = vpack.c.b16 %v361, %v360
    %v374 = vpack.c.b16 %v363, %v362
    %v375 = vpack.c.b16 %v365, %v364
    %v376 = vpack.c.b16 %v367, %v366
    %v377 = vpack.c.b16 %v369, %v368
    %386 = vmatprep.subr.bf16.mxu0 0
    %387 = vmatpush1.bf16.msra.mxu0 %v370
    %388 = vmatprep.subr.bf16.mxu0 0
    %389 = vmatpush1.bf16.msra.mxu0 %v371
    %390 = vmatprep.subr.bf16.mxu0 0
    %391 = vmatpush1.bf16.msra.mxu0 %v372
    %392 = vmatprep.subr.bf16.mxu0 0
    %393 = vmatpush1.bf16.msra.mxu0 %v373
    %394 = vmatprep.subr.bf16.mxu0 0
    %395 = vmatpush1.bf16.msra.mxu0 %v374
    %396 = vmatprep.subr.bf16.mxu0 0
    %397 = vmatpush1.bf16.msra.mxu0 %v375
    %398 = vmatprep.subr.bf16.mxu0 0
    %399 = vmatpush1.bf16.msra.mxu0 %v376
    %400 = vmatprep.subr.bf16.mxu0 0
    %401 = vmatpush1.bf16.msra.mxu0 %v377
    %402 = vmatprep.subr.bf16.mxu0 0
    %403 = vmatpush1.bf16.msra.mxu0 0
    %404 = vmatprep.subr.bf16.mxu0 0
    %405 = vmatpush1.bf16.msra.mxu0 0
    %406 = vmatprep.subr.bf16.mxu0 0
    %407 = vmatpush1.bf16.msra.mxu0 0
    %408 = vmatprep.subr.bf16.mxu0 0
    %409 = vmatpush1.bf16.msra.mxu0 0
    %410 = vmatprep.subr.bf16.mxu0 0
    %411 = vmatpush1.bf16.msra.mxu0 0
    %412 = vmatprep.subr.bf16.mxu0 0
    %413 = vmatpush1.bf16.msra.mxu0 0
    %414 = vmatprep.subr.bf16.mxu0 0
    %415 = vmatpush1.bf16.msra.mxu0 0
    %416 = vmatprep.subr.bf16.mxu0 0
    %417 = vmatpush1.bf16.msra.mxu0 0
    %418 = vmatprep.mubr.bf16.mxu0 0
    %419 = vmatmul.mubr.bf16.gmra.mrb[0].mxu0 %v314
    %v420 = vpop.f32.mrb[0].mxu0
    %v421 = vadd.f32 %v336, %v420
    %v422 = vpop.f32.mrb[0].mxu0
    %v423 = vpop.f32.mrb[0].mxu0
    %v424 = vpop.f32.mrb[0].mxu0
    %425 = vdwg.mxu0
    %v426 = vmax.f32 %v421, 0.0
    %v427 = vpack.c.bf16 %v426, %v426
    %v428 = vld [vmem:[#allocation11] sm:$0xf]
    %v429 = vld [vmem:[#allocation11 + $0x4] sm:$0xf]
    %v430 = vld [vmem:[#allocation11 + $0x8] sm:$0xf]
    %v431 = vld [vmem:[#allocation11 + $0xc] sm:$0xf]
    %v432 = vld [vmem:[#allocation11 + $0x10] sm:$0xf]
    %v433 = vld [vmem:[#allocation11 + $0x14] sm:$0xf]
    %v434 = vld [vmem:[#allocation11 + $0x18] sm:$0xf]
    %v435 = vld [vmem:[#allocation11 + $0x1c] sm:$0xf]
    %v436 = vld [vmem:[#allocation11 + $0x20] sm:$0xf]
    %v437 = vld [vmem:[#allocation11 + $0x24] sm:$0xf]
    %v438 = vld [vmem:[#allocation11 + $0x28] sm:$0xf]
    %v439 = vld [vmem:[#allocation11 + $0x2c] sm:$0xf]
    %v440 = vld [vmem:[#allocation11 + $0x30] sm:$0xf]
    %v441 = vld [vmem:[#allocation11 + $0x34] sm:$0xf]
    %v442 = vld [vmem:[#allocation11 + $0x38] sm:$0xf]
    %v443 = vld [vmem:[#allocation11 + $0x3c] sm:$0xf]
    %v444 = vld [vmem:[%s8] sm:$0x1]
    %v446 = vlaneseq
    %v447 = vshrl.u32 %v446, 7
    %v448 = vsub.s32 0, %v447
    %v449 = vrot.slane %v444, %v448
    %v467 = vunpack.c.l.b16 %v428
    %v468 = vunpack.c.l.b16 %v429
    %v469 = vunpack.c.l.b16 %v430
    %v470 = vunpack.c.l.b16 %v431
    %v471 = vunpack.c.l.b16 %v432
    %v472 = vunpack.c.l.b16 %v433
    %v473 = vunpack.c.l.b16 %v434
    %v474 = vunpack.c.l.b16 %v435
    %v475 = vunpack.c.l.b16 %v436
    %v476 = vunpack.c.l.b16 %v437
    %v477 = vunpack.c.l.b16 %v438
    %v478 = vunpack.c.l.b16 %v439
    %v479 = vunpack.c.l.b16 %v440
    %v480 = vunpack.c.l.b16 %v441
    %v481 = vunpack.c.l.b16 %v442
    %v482 = vunpack.c.l.b16 %v443
    %v483 = vpack.c.b16 %v468, %v467
    %v484 = vpack.c.b16 %v470, %v469
    %v485 = vpack.c.b16 %v472, %v471
    %v486 = vpack.c.b16 %v474, %v473
    %v487 = vpack.c.b16 %v476, %v475
    %v488 = vpack.c.b16 %v478, %v477
    %v489 = vpack.c.b16 %v480, %v479
    %v490 = vpack.c.b16 %v482, %v481
    %499 = vmatprep.subr.bf16.mxu0 0
    %500 = vmatpush1.bf16.msra.mxu0 %v483
    %501 = vmatprep.subr.bf16.mxu0 0
    %502 = vmatpush1.bf16.msra.mxu0 %v484
    %503 = vmatprep.subr.bf16.mxu0 0
    %504 = vmatpush1.bf16.msra.mxu0 %v485
    %505 = vmatprep.subr.bf16.mxu0 0
    %506 = vmatpush1.bf16.msra.mxu0 %v486
    %507 = vmatprep.subr.bf16.mxu0 0
    %508 = vmatpush1.bf16.msra.mxu0 %v487
    %509 = vmatprep.subr.bf16.mxu0 0
    %510 = vmatpush1.bf16.msra.mxu0 %v488
    %511 = vmatprep.subr.bf16.mxu0 0
    %512 = vmatpush1.bf16.msra.mxu0 %v489
    %513 = vmatprep.subr.bf16.mxu0 0
    %514 = vmatpush1.bf16.msra.mxu0 %v490
    %515 = vmatprep.subr.bf16.mxu0 0
    %516 = vmatpush1.bf16.msra.mxu0 0
    %517 = vmatprep.subr.bf16.mxu0 0
    %518 = vmatpush1.bf16.msra.mxu0 0
    %519 = vmatprep.subr.bf16.mxu0 0
    %520 = vmatpush1.bf16.msra.mxu0 0
    %521 = vmatprep.subr.bf16.mxu0 0
    %522 = vmatpush1.bf16.msra.mxu0 0
    %523 = vmatprep.subr.bf16.mxu0 0
    %524 = vmatpush1.bf16.msra.mxu0 0
    %525 = vmatprep.subr.bf16.mxu0 0
    %526 = vmatpush1.bf16.msra.mxu0 0
    %527 = vmatprep.subr.bf16.mxu0 0
    %528 = vmatpush1.bf16.msra.mxu0 0
    %529 = vmatprep.subr.bf16.mxu0 0
    %530 = vmatpush1.bf16.msra.mxu0 0
    %531 = vmatprep.mubr.bf16.mxu0 0
    %532 = vmatmul.mubr.bf16.gmra.mrb[0].mxu0 %v427
    %v533 = vpop.f32.mrb[0].mxu0
    %v534 = vadd.f32 %v449, %v533
    %v535 = vpop.f32.mrb[0].mxu0
    %v536 = vpop.f32.mrb[0].mxu0
    %v537 = vpop.f32.mrb[0].mxu0
    %538 = vdwg.mxu0
    %v539 = vpack.c.bf16 %v534, %v534
    %v542 = vunpack.c.l.s4 1966171168
    %v543 = vunpack.c.0.s8 %v542
    %v544 = vlaneseq
    %v545 = vshrl.u32 %v544, 7
    %v546 = vsub.s32 %v543, %v545
    %v547 = vrot.slane %v539, %v546
    %v548 = vcombine.high %v547, %v547
    %v550 = vunpack.c.l.s4 1966171168
    %v551 = vunpack.c.0.s8 %v550
    %v552 = vlaneseq
    %v553 = vshrl.u32 %v552, 7
    %v554 = vsub.s32 %v551, %v553
    %v555 = vrot.slane %v547, %v554
    %v557 = vunpack.c.l.s4 1966171168
    %v558 = vunpack.c.0.s8 %v557
    %v559 = vlaneseq
    %v560 = vshrl.u32 %v559, 7
    %v561 = vsub.s32 %v558, %v560
    %v562 = vrot.slane %v548, %v561
    %v563 = vcombine.high %v555, %v555
    %v564 = vcombine.high %v562, %v562
    %569 = vst [vmem:[#allocation12] sm:$0x1] %v555
    %570 = vst [vmem:[#allocation12 + $0x1] sm:$0x1] %v562
    %571 = vst [vmem:[#allocation12 + $0x2] sm:$0x1] %v563
    %572 = vst [vmem:[#allocation12 + $0x3] sm:$0x1] %v564
    // Predicated region
    $region58: #{tpu_custom_call.1} parent=1 // pred_check
      _
    $region59: #{tpu_custom_call.1} parent=1 // pred_check_branch
      %574 = sbr.rel (0) target = $region61
    $region60: #{tpu_custom_call.1} parent=1 // pred_region
      %s576 = ssub.s32 64, 16
      %577 = vsyncadd [#allocation5], %s576
      %s578 = sshll.u32 [#allocation12], 4
      %s579 = int_to_ptr.vmem [resolvable:$true] %s578
      %584 = dma.vmem_to_hbm [thread:$0]  %s579, 16, %s9, [#allocation5], 16, 16, 1
    $region61: #{tpu_custom_call.1} parent=1 // pred_fallthru
      _
    // Predicated region
    $region62: #{tpu_custom_call.1} parent=1 // pred_check
      _
    $region63: #{tpu_custom_call.1} parent=1 // pred_check_branch
      %586 = sbr.rel (0) target = $region65
    $region64: #{tpu_custom_call.1} parent=1 // pred_region
      %587 = dma.done [#allocation5], 64
    $region65: #{tpu_custom_call.1} parent=1 // pred_fallthru
      _
    %588 = vsyncpa [#allocation4], 1
    %589 = vsyncpa [#allocation7], 1
    %590 = vsyncpa [#allocation10], 1
    %591 = vsyncpa [#allocation5], 1

</llo_original>
